<compile_context>
chip_gen: v7x
topology: tpu7x:2x2x1
jax: 0.10.0
libtpu: 0.0.40
codegen_flags: <defaults>
</compile_context>

<pallas_src>
import jax
import jax.numpy as jnp
from jax.experimental import pallas as pl
from jax.experimental.pallas import tpu as pltpu


_TARGET_TILE_BYTES = 2 << 20  # ~2 MiB/tile; 4 live buffers (in+out, double-buffered) = 8 MiB


def _copy_kernel(x_ref, o_ref):
    # Straight VMEM copy — exact semantics of `return x`.
    o_ref[...] = x_ref[...]


def _lane_dense_layout(n: int) -> tuple[int, int]:
    """Pick a (rows, cols) factorization with a large, 128-multiple last dim."""
    for cols in (1024, 512, 256, 128):
        if n % cols == 0:
            return n // cols, cols
    # Odd / tiny sizes: single full-width row (full-dim block is always legal).
    return 1, n


def _row_block(rows: int, cols: int, itemsize: int) -> int:
    """Largest sublane-aligned row block that divides `rows` and fits the tile budget."""
    sub = max(8, 32 // max(1, itemsize))  # sublane packing: 8 (f32), 16 (bf16), 32 (i8)
    target = max(sub, _TARGET_TILE_BYTES // max(1, cols * itemsize))
    if rows <= target:
        return rows  # whole row extent in one (full-dim) block
    start = (target // sub) * sub
    for br in range(start, 0, -sub):
        if rows % br == 0:
            return br  # evenly dividing -> unmasked lane-dense loads/stores
    return rows


def stylegan2_forward(x: jax.Array) -> jax.Array:
    """Pallas implementation of StyleGAN2.forward (identity pass-through)."""
    orig_shape = x.shape
    n = x.size
    rows, cols = _lane_dense_layout(n)
    x2 = x.reshape(rows, cols)  # lane-dense 2D slab

    br = _row_block(rows, cols, x2.dtype.itemsize)
    grid = (rows // br,)

    out2 = pl.pallas_call(
        _copy_kernel,
        out_shape=jax.ShapeDtypeStruct((rows, cols), x2.dtype),
        grid=grid,
        in_specs=[pl.BlockSpec((br, cols), lambda i: (i, 0))],
        out_specs=pl.BlockSpec((br, cols), lambda i: (i, 0)),
        input_output_aliases={0: 0},  # let XLA reuse the input HBM buffer for the output
        compiler_params=pltpu.CompilerParams(
            dimension_semantics=("parallel",)),
    )(x2)

    return out2.reshape(orig_shape)


# TODO(synk): the Generator/Discriminator/ANet/PNet sub-networks owned by
# StyleGAN2 are never invoked inside StyleGAN2.forward, so their parameters and
# sub-kernels are intentionally not materialized here.


if __name__ == "__main__":
    key = jax.random.PRNGKey(0)
    # Small NCHW RGB-like batch, consistent with the module's input convention.
    x = jax.random.normal(key, (2, 3, 16, 16), dtype=jnp.float32)

    y = jax.block_until_ready(stylegan2_forward(x))
    assert y.shape == x.shape and y.dtype == x.dtype
    assert bool(jnp.array_equal(y, x)), "identity forward mismatch"

    # Exercise the multi-tile pipelined path (rows=1024 -> 512-row blocks, grid=(2,)).
    x_big = jax.random.normal(jax.random.PRNGKey(1), (8, 512, 16, 16), dtype=jnp.float32)
    y_big = jax.block_until_ready(stylegan2_forward(x_big))
    assert bool(jnp.array_equal(y_big, x_big)), "identity forward mismatch (tiled path)"

    print("KERNEL_OK")
</pallas_src>

<mosaic_0001>
module attributes {stable_mosaic.version = 11 : i64} {
  func.func @_copy_kernel(%arg0: i32, %arg1: memref<3x512xf32, #tpu.memory_space<vmem>>, %arg2: memref<3x512xf32, #tpu.memory_space<vmem>>) attributes {dimension_semantics = [#tpu.dimension_semantics<parallel>], iteration_bounds = array<i64: 1>, scalar_prefetch = 0 : i64, scratch_operands = 0 : i64, tpu.core_type = #tpu.core_type<tc>, window_params = [{transform_indices = @transform_0, window_bounds = array<i64: 3, 512>}, {transform_indices = @transform_1, window_bounds = array<i64: 3, 512>}]} {
    %c0 = arith.constant 0 : index
    %c0_0 = arith.constant 0 : index
    %0 = vector.load %arg1[%c0, %c0_0] : memref<3x512xf32, #tpu.memory_space<vmem>>, vector<3x512xf32>
    %c0_1 = arith.constant 0 : index
    %c0_2 = arith.constant 0 : index
    %1 = vector.load %arg2[%c0_1, %c0_2] : memref<3x512xf32, #tpu.memory_space<vmem>>, vector<3x512xf32>
    tpu.vector_store %arg2[%c0_1, %c0_2], %0 {strides = array<i32>} : memref<3x512xf32, #tpu.memory_space<vmem>>, vector<3x512xf32>,
    return
  }
  func.func @transform_0(%arg0: i32) -> (i32, i32) {
    %c0_i32 = arith.constant 0 : i32
    %c0_i32_0 = arith.constant 0 : i32
    return %arg0, %c0_i32 : i32, i32
  }
  func.func @transform_1(%arg0: i32) -> (i32, i32) {
    %c0_i32 = arith.constant 0 : i32
    %c0_i32_0 = arith.constant 0 : i32
    return %arg0, %c0_i32 : i32, i32
  }
}

</mosaic_0001>

<llo_original>
// kernel: tpu_custom_call.1
$region0: #{tpu_custom_call.1}
  #allocation0 [shape = 'u32[]', space=smem, size = 0x4, offset = 0x4, fixed_abs, tag = 'smem constant byte address 0x4 - core index']
  #allocation1 [shape = 'u32[144,128]{1,0:T(1,128)}', space=vmem, size = 0x12000, scoped, tag = 'internal scratch']
  %s0 = inlined_call_operand.hbm [shape: f32[3,512], index: 0, kind: input, shape index: {}, may-alias: {0,1}]
  %s1 = inlined_call_operand.hbm [shape: f32[3,512], index: 1, kind: output, shape index: {}, may-alias: {0,1}]
  %s2 = sld [smem:[#allocation0]]
  $region18: #{tpu_custom_call.1} parent=0
    _
  %s4 = ssub.s32 1, %s2
  %s5 = scalar_select 0, %s4, %s2
  $region1: #{tpu_custom_call.1} parent=0
    #allocation2 [shape = 'u8[8192]{0}', space=vmem, size = 0x2000, scoped, tag = 'input window, operand 0, single buffered']
    #allocation3 [shape = 's32[1]{0}', space=sflag, size = 0x4, scoped, tag = 'scoped memory for tpu_custom_call.1']
    #allocation4 [shape = 's32[1]{0}', space=sflag, size = 0x4, scoped, tag = 'scoped memory for tpu_custom_call.1']
    #allocation5 [shape = 'u8[8192]{0}', space=vmem, size = 0x2000, scoped, tag = 'output window, operand 0, single buffered']
    %6 = vsyncpa [#allocation3], 0
    %7 = vsyncpa [#allocation4], 0
    // Predicated region
    $region2: #{tpu_custom_call.1} parent=1 // pred_check
      _
    $region3: #{tpu_custom_call.1} parent=1 // pred_check_branch
      %9 = sbr.rel (0) target = $region5
    $region4: #{tpu_custom_call.1} parent=1 // pred_region
      %s11 = ssub.s32 256, 256
      %12 = vsyncadd [#allocation3], %s11
      %s14 = sshll.u32 [#allocation2], 4
      %s15 = int_to_ptr.vmem [resolvable:$true] %s14
      %17 = dma.hbm_to_vmem [thread:$0]  %s0, 256, %s15, [#allocation3]
    $region5: #{tpu_custom_call.1} parent=1 // pred_fallthru
      _
    // Predicated region
    $region6: #{tpu_custom_call.1} parent=1 // pred_check
      _
    $region7: #{tpu_custom_call.1} parent=1 // pred_check_branch
      %19 = sbr.rel (0) target = $region9
    $region8: #{tpu_custom_call.1} parent=1 // pred_region
      %20 = dma.done [#allocation3], 256
    $region9: #{tpu_custom_call.1} parent=1 // pred_fallthru
      _
    %v21 = vld [vmem:[#allocation2] sm:$0x77]
    %v22 = vld [vmem:[#allocation2 + $0x8] sm:$0x77]
    %23 = vst [vmem:[#allocation5] sm:$0x77] %v21
    %24 = vst [vmem:[#allocation5 + $0x8] sm:$0x77] %v22
    // Predicated region
    $region10: #{tpu_custom_call.1} parent=1 // pred_check
      _
    $region11: #{tpu_custom_call.1} parent=1 // pred_check_branch
      %26 = sbr.rel (0) target = $region13
    $region12: #{tpu_custom_call.1} parent=1 // pred_region
      %s28 = ssub.s32 256, 256
      %29 = vsyncadd [#allocation4], %s28
      %s31 = sshll.u32 [#allocation5], 4
      %s32 = int_to_ptr.vmem [resolvable:$true] %s31
      %34 = dma.vmem_to_hbm [thread:$0]  %s32, 256, %s1, [#allocation4]
    $region13: #{tpu_custom_call.1} parent=1 // pred_fallthru
      _
    // Predicated region
    $region14: #{tpu_custom_call.1} parent=1 // pred_check
      _
    $region15: #{tpu_custom_call.1} parent=1 // pred_check_branch
      %36 = sbr.rel (0) target = $region17
    $region16: #{tpu_custom_call.1} parent=1 // pred_region
      %37 = dma.done [#allocation4], 256
    $region17: #{tpu_custom_call.1} parent=1 // pred_fallthru
      _
    %38 = vsyncpa [#allocation3], 1
    %39 = vsyncpa [#allocation4], 1

</llo_original>
